<compile_context>
chip_gen: v5e
topology: v5e:2x2
jax: 0.10.0
libtpu: 0.0.40
codegen_flags: <defaults>
</compile_context>

<pallas_src>
import numpy as np
import jax
import jax.numpy as jnp
from jax.experimental import pallas as pl
from jax.experimental.pallas import tpu as pltpu

# --- constants from the PyTorch module -------------------------------------
O1 = ['sqrt', 'square', 'sin', 'cos', 'tanh', 'stand_scaler', 'minmax_scaler',
      'quan_trans', 'sigmoid', 'log', 'reciprocal']
O2 = ['+', '-', '*', '/']
OP_DIM = len(O1 + O2)  # 15 (used only in 'tail' select mode)


def _elu(x):
    # PyTorch F.elu with alpha=1.0 (reference only)
    return jnp.where(x > 0, x, jnp.exp(x) - 1.0)


# --- Pallas kernel: actor over all clusters of a batch block + softmax ------
def cluster_actor_kernel(state_ref, clu_ref, w1s_ref, w1c_ref, b1_ref,
                         wo_ref, bo_ref, prob_ref):
    BB, S = state_ref.shape            # (batch_block, state_dim)
    BBC, CSD = clu_ref.shape           # (batch_block * C, cluster_state_dim)
    C = BBC // BB
    H = b1_ref.shape[1]

    # fc1, split: state half computed once per batch row, cluster half per (row, cluster)
    hs = jnp.dot(state_ref[...], w1s_ref[...],
                 preferred_element_type=jnp.float32) + b1_ref[...]          # (BB, H)
    hc = jnp.dot(clu_ref[...], w1c_ref[...],
                 preferred_element_type=jnp.float32)                         # (BB*C, H)

    # replicate each row's state contribution across that row's C clusters and keep
    # everything 2-D (BB*C, H) through the EUP-heavy phase (no 3-D intermediates here).
    hs_rep = jnp.broadcast_to(hs.reshape(BB, 1, H), (BB, C, H)).reshape(BBC, H)
    h = hc + hs_rep                                                          # (BB*C, H)

    # fused double ELU (fc2 is skipped in ClusterActionNet.forward):
    # sign(elu(x)) == sign(x)  =>  elu(elu(x)) = where(x>0, x, exp(exp(x)-1)-1)
    neg = jnp.exp(jnp.exp(h) - 1.0) - 1.0
    h = jnp.where(h > 0, h, neg)

    # out-projection (hidden -> 1): VPU multiply + XLU lane reduce (no N=1 matmul).
    hw = h * wo_ref[...]                                                     # (BB*C, H)
    q = jnp.sum(hw.reshape(BB, C, H), axis=-1)                               # (BB, C)
    q = jnp.tanh(q + bo_ref[0, 0])                                           # scalar from SMEM

    # numerically-stable softmax over the cluster (lane) axis, per batch row
    m = jnp.max(q, axis=-1, keepdims=True)
    e = jnp.exp(q - m)
    prob_ref[...] = e * pl.reciprocal(jnp.sum(e, axis=-1, keepdims=True), approx=False)


def cluster_actor_critic_forward(state_emb, cluster_states, params, *, batch_block=512):
    """Batched ClusterActorCritic.forward (cached path).

    state_emb:      (B, state_dim)            f32  -- cached state embeddings
    cluster_states: (B, C, cluster_state_dim) f32  -- cached cluster states
    Returns (prob (B, C), {c: cluster_states[:, c]}, state_emb) -- B=1 reproduces the
    single-call PyTorch semantics (prob.reshape(-1)).
    """
    B, C, CSD = cluster_states.shape
    S = state_emb.shape[-1]
    H = params['b1'].shape[-1]

    state_emb = state_emb.astype(jnp.float32)
    cluster_states = cluster_states.astype(jnp.float32)

    # Grid shaping: one big block if it fits; otherwise a small EVEN number of steps
    # (so v7x's two TensorCores split the "parallel" batch axis), with BB a multiple of
    # 8 to satisfy the sublane divisibility constraint when the block != full array.
    if B <= batch_block:
        BB, steps = B, 1
    else:
        steps = pl.cdiv(B, batch_block)
        if steps % 2:
            steps += 1
        BB = ((B + steps - 1) // steps + 7) // 8 * 8
    Bp = BB * steps
    pad = Bp - B

    if pad:
        state_p = jnp.concatenate([state_emb, jnp.zeros((pad, S), jnp.float32)], axis=0)
        clu_p = jnp.concatenate([cluster_states,
                                 jnp.zeros((pad, C, CSD), jnp.float32)], axis=0)
    else:
        state_p, clu_p = state_emb, cluster_states
    clu_flat = clu_p.reshape(Bp * C, CSD)          # rows = batch*cluster (row-major, free)

    flops = 2 * Bp * S * H + 2 * Bp * C * CSD * H + 2 * Bp * C * H
    transcendentals = 2 * Bp * C * H + 3 * Bp * C
    bytes_accessed = 4 * (Bp * S + Bp * C * CSD + S * H + CSD * H + 2 * H + 1 + Bp * C)

    prob = pl.pallas_call(
        cluster_actor_kernel,
        out_shape=jax.ShapeDtypeStruct((Bp, C), jnp.float32),
        grid=(steps,),
        in_specs=[
            pl.BlockSpec((BB, S), lambda b: (b, 0)),          # state_emb rows
            pl.BlockSpec((BB * C, CSD), lambda b: (b, 0)),    # cluster rows
            pl.BlockSpec((S, H), lambda b: (0, 0)),           # w1_s (resident)
            pl.BlockSpec((CSD, H), lambda b: (0, 0)),         # w1_c (resident)
            pl.BlockSpec((1, H), lambda b: (0, 0)),           # b1
            pl.BlockSpec((1, H), lambda b: (0, 0)),           # wo (row vector)
            pl.BlockSpec(memory_space=pltpu.MemorySpace.SMEM),  # bo scalar in SMEM
        ],
        out_specs=pl.BlockSpec((BB, C), lambda b: (b, 0)),
        compiler_params=pltpu.CompilerParams(
            dimension_semantics=("parallel",)),               # megacore-shard batch on v7x
        cost_estimate=pl.CostEstimate(flops=flops,
                                      transcendentals=transcendentals,
                                      bytes_accessed=bytes_accessed),
    )(state_p, clu_flat, params['w1_s'], params['w1_c'],
      params['b1'], params['wo'], params['bo'])

    if pad:
        prob = prob[:B]
    select_cluster_state_list = {i: cluster_states[:, i, :] for i in range(C)}
    return prob, select_cluster_state_list, state_emb


# --- deterministic parameter init (mirrors module __init__ shapes) ----------
def init_actor_params(key, state_dim, cluster_state_dim, hidden_dim, init_w=1e-6):
    D = state_dim + cluster_state_dim
    k1, k2, k3, k4 = jax.random.split(key, 4)
    v = 1.0 / np.sqrt(hidden_dim)              # fanin_init(weight.size()) -> 1/sqrt(size[0])
    w1 = jax.random.uniform(k1, (D, hidden_dim), jnp.float32, -v, v)       # fc1.weight.T
    b1 = jax.random.uniform(k2, (1, hidden_dim), jnp.float32,
                            -1.0 / np.sqrt(D), 1.0 / np.sqrt(D))           # fc1.bias
    # out.weight.data.normal_(-init_w, init_w)  == Normal(mean=-init_w, std=init_w)
    wo = -init_w + init_w * jax.random.normal(k3, (1, hidden_dim), jnp.float32)
    bo = jax.random.uniform(k4, (1, 1), jnp.float32,
                            -1.0 / np.sqrt(hidden_dim), 1.0 / np.sqrt(hidden_dim))  # out.bias
    return {
        'w1_s': w1[:state_dim],      # split once on the host: state half of fc1
        'w1_c': w1[state_dim:],      # cluster half of fc1
        'b1': b1, 'wo': wo, 'bo': bo,
    }


def _reference_prob(state_emb, cluster_states, params):
    B, C, CSD = cluster_states.shape
    S = state_emb.shape[-1]
    w1_full = jnp.concatenate([params['w1_s'], params['w1_c']], axis=0)      # (S+csd, H)
    x_full = jnp.concatenate(
        [jnp.broadcast_to(state_emb[:, None, :], (B, C, S)), cluster_states], axis=-1)
    h_ref = _elu(_elu(jnp.einsum('bcd,dh->bch', x_full, w1_full) + params['b1']))
    q_ref = jnp.tanh(jnp.sum(h_ref * params['wo'], axis=-1) + params['bo'][0, 0])  # (B, C)
    return jax.nn.softmax(q_ref, axis=-1)


if __name__ == "__main__":
    # small shapes consistent with the module; B = envs/timesteps batched together
    state_dim = 32
    cluster_state_dim = 32
    hidden_dim = 64
    num_clusters = 8
    batch = 4

    key = jax.random.PRNGKey(0)
    kp, ks, kc, ks2, kc2 = jax.random.split(key, 5)

    params = init_actor_params(kp, state_dim, cluster_state_dim, hidden_dim, init_w=1e-6)
    state_emb = jax.random.normal(ks, (batch, state_dim), jnp.float32)
    cluster_states = jax.random.normal(kc, (batch, num_clusters, cluster_state_dim),
                                       jnp.float32)

    # --- test 1: small batch, single grid step ---
    prob, cluster_state_list, state_emb_out = cluster_actor_critic_forward(
        state_emb, cluster_states, params)
    prob = jax.block_until_ready(prob)

    prob_ref = _reference_prob(state_emb, cluster_states, params)
    assert prob.shape == (batch, num_clusters)
    assert float(jnp.abs(prob - prob_ref).max()) < 1e-5
    assert float(jnp.abs(prob.sum(axis=-1) - 1.0).max()) < 1e-5

    # --- test 2: larger batch, multi-step (even) grid + ragged padding path ---
    batch2 = 300
    state_emb2 = jax.random.normal(ks2, (batch2, state_dim), jnp.float32)
    cluster_states2 = jax.random.normal(kc2, (batch2, num_clusters, cluster_state_dim),
                                        jnp.float32)
    prob2, _, _ = cluster_actor_critic_forward(state_emb2, cluster_states2, params,
                                               batch_block=128)
    prob2 = jax.block_until_ready(prob2)

    prob2_ref = _reference_prob(state_emb2, cluster_states2, params)
    assert prob2.shape == (batch2, num_clusters)
    assert float(jnp.abs(prob2 - prob2_ref).max()) < 1e-5
    assert float(jnp.abs(prob2.sum(axis=-1) - 1.0).max()) < 1e-5

    print("KERNEL_OK")
</pallas_src>

<mosaic_0001>
module attributes {stable_mosaic.version = 11 : i64} {
  func.func @cluster_actor_kernel(%arg0: i32, %arg1: memref<4x32xf32, #tpu.memory_space<vmem>>, %arg2: memref<32x32xf32, #tpu.memory_space<vmem>>, %arg3: memref<32x64xf32, #tpu.memory_space<vmem>>, %arg4: memref<32x64xf32, #tpu.memory_space<vmem>>, %arg5: memref<1x64xf32, #tpu.memory_space<vmem>>, %arg6: memref<1x64xf32, #tpu.memory_space<vmem>>, %arg7: memref<1x1xf32, #tpu.memory_space<smem>>, %arg8: memref<4x8xf32, #tpu.memory_space<vmem>>) attributes {dimension_semantics = [#tpu.dimension_semantics<parallel>], iteration_bounds = array<i64: 1>, scalar_prefetch = 0 : i64, scratch_operands = 0 : i64, tpu.core_type = #tpu.core_type<tc>, window_params = [{transform_indices = @transform_0, window_bounds = array<i64: 4, 32>}, {transform_indices = @transform_1, window_bounds = array<i64: 32, 32>}, {pipeline_mode = #tpu.pipeline_mode<synchronous>, transform_indices = @transform_2, window_bounds = array<i64: 32, 64>}, {pipeline_mode = #tpu.pipeline_mode<synchronous>, transform_indices = @transform_3, window_bounds = array<i64: 32, 64>}, {pipeline_mode = #tpu.pipeline_mode<synchronous>, transform_indices = @transform_4, window_bounds = array<i64: 1, 64>}, {pipeline_mode = #tpu.pipeline_mode<synchronous>, transform_indices = @transform_5, window_bounds = array<i64: 1, 64>}, {transform_indices = @transform_6, window_bounds = array<i64: 1, 1>}, {transform_indices = @transform_7, window_bounds = array<i64: 4, 8>}]} {
    %c0 = arith.constant 0 : index
    %c0_0 = arith.constant 0 : index
    %0 = vector.load %arg1[%c0, %c0_0] : memref<4x32xf32, #tpu.memory_space<vmem>>, vector<4x32xf32>
    %c0_1 = arith.constant 0 : index
    %c0_2 = arith.constant 0 : index
    %1 = vector.load %arg3[%c0_1, %c0_2] : memref<32x64xf32, #tpu.memory_space<vmem>>, vector<32x64xf32>
    %cst = arith.constant dense<0.000000e+00> : vector<4x64xf32>
    %2 = tpu.matmul %0, %1, %cst {dimension_numbers = #tpu.dot_dimension_numbers<[1], [0], [0], [1], [0, 0, 1, 1], [], []>} : vector<4x32xf32>, vector<32x64xf32>, vector<4x64xf32> -> vector<4x64xf32>
    %c0_3 = arith.constant 0 : index
    %c0_4 = arith.constant 0 : index
    %3 = vector.load %arg5[%c0_3, %c0_4] : memref<1x64xf32, #tpu.memory_space<vmem>>, vector<1x64xf32>
    %4 = vector.broadcast %3 : vector<1x64xf32> to vector<4x64xf32>
    %5 = arith.addf %2, %4 : vector<4x64xf32>
    %c0_5 = arith.constant 0 : index
    %c0_6 = arith.constant 0 : index
    %6 = vector.load %arg2[%c0_5, %c0_6] : memref<32x32xf32, #tpu.memory_space<vmem>>, vector<32x32xf32>
    %c0_7 = arith.constant 0 : index
    %c0_8 = arith.constant 0 : index
    %7 = vector.load %arg4[%c0_7, %c0_8] : memref<32x64xf32, #tpu.memory_space<vmem>>, vector<32x64xf32>
    %cst_9 = arith.constant dense<0.000000e+00> : vector<32x64xf32>
    %8 = tpu.matmul %6, %7, %cst_9 {dimension_numbers = #tpu.dot_dimension_numbers<[1], [0], [0], [1], [0, 0, 1, 1], [], []>} : vector<32x32xf32>, vector<32x64xf32>, vector<32x64xf32> -> vector<32x64xf32>
    %9 = vector.shape_cast %5 : vector<4x64xf32> to vector<4x1x64xf32>
    %10 = vector.shape_cast %9 : vector<4x1x64xf32> to vector<4x1x64xf32>
    %11 = vector.broadcast %10 : vector<4x1x64xf32> to vector<4x8x64xf32>
    %12 = vector.shape_cast %11 : vector<4x8x64xf32> to vector<32x64xf32>
    %13 = arith.addf %8, %12 : vector<32x64xf32>
    %14 = math.exp %13 : vector<32x64xf32>
    %cst_10 = arith.constant 1.000000e+00 : f32
    %15 = vector.broadcast %cst_10 : f32 to vector<32x64xf32>
    %16 = arith.subf %14, %15 : vector<32x64xf32>
    %17 = math.exp %16 : vector<32x64xf32>
    %cst_11 = arith.constant 1.000000e+00 : f32
    %18 = vector.broadcast %cst_11 : f32 to vector<32x64xf32>
    %19 = arith.subf %17, %18 : vector<32x64xf32>
    %cst_12 = arith.constant 0.000000e+00 : f32
    %20 = vector.broadcast %cst_12 : f32 to vector<32x64xf32>
    %21 = arith.cmpf ogt, %13, %20 : vector<32x64xf32>
    %22 = arith.select %21, %13, %19 : vector<32x64xi1>, vector<32x64xf32>
    %c0_13 = arith.constant 0 : index
    %c0_14 = arith.constant 0 : index
    %23 = vector.load %arg6[%c0_13, %c0_14] : memref<1x64xf32, #tpu.memory_space<vmem>>, vector<1x64xf32>
    %24 = vector.broadcast %23 : vector<1x64xf32> to vector<32x64xf32>
    %25 = arith.mulf %22, %24 : vector<32x64xf32>
    %26 = vector.shape_cast %25 : vector<32x64xf32> to vector<4x8x64xf32>
    %cst_15 = arith.constant dense<0.000000e+00> : vector<4x8xf32>
    %27 = vector.multi_reduction <add>, %26, %cst_15 [2] : vector<4x8x64xf32> to vector<4x8xf32>
    %c0_16 = arith.constant 0 : index
    %c0_17 = arith.constant 0 : index
    %28 = memref.load %arg7[%c0_16, %c0_17] : memref<1x1xf32, #tpu.memory_space<smem>>
    %29 = vector.broadcast %28 : f32 to vector<4x8xf32>
    %30 = arith.addf %27, %29 : vector<4x8xf32>
    %31 = math.tanh %30 : vector<4x8xf32>
    %cst_18 = arith.constant dense<0xFF800000> : vector<4xf32>
    %32 = vector.multi_reduction <maximumf>, %31, %cst_18 [1] : vector<4x8xf32> to vector<4xf32>
    %33 = vector.shape_cast %32 : vector<4xf32> to vector<4x1xf32>
    %34 = vector.broadcast %33 : vector<4x1xf32> to vector<4x8xf32>
    %35 = arith.subf %31, %34 : vector<4x8xf32>
    %36 = math.exp %35 : vector<4x8xf32>
    %cst_19 = arith.constant dense<0.000000e+00> : vector<4xf32>
    %37 = vector.multi_reduction <add>, %36, %cst_19 [1] : vector<4x8xf32> to vector<4xf32>
    %38 = vector.shape_cast %37 : vector<4xf32> to vector<4x1xf32>
    %39 = tpu.reciprocal %38 : vector<4x1xf32> -> vector<4x1xf32>
    %40 = vector.broadcast %39 : vector<4x1xf32> to vector<4x8xf32>
    %41 = arith.mulf %36, %40 : vector<4x8xf32>
    %c0_20 = arith.constant 0 : index
    %c0_21 = arith.constant 0 : index
    %42 = vector.load %arg8[%c0_20, %c0_21] : memref<4x8xf32, #tpu.memory_space<vmem>>, vector<4x8xf32>
    tpu.vector_store %arg8[%c0_20, %c0_21], %41 {strides = array<i32>} : memref<4x8xf32, #tpu.memory_space<vmem>>, vector<4x8xf32>,
    return
  }
  func.func @transform_0(%arg0: i32) -> (i32, i32) {
    %c0_i32 = arith.constant 0 : i32
    %c0_i32_0 = arith.constant 0 : i32
    return %arg0, %c0_i32 : i32, i32
  }
  func.func @transform_1(%arg0: i32) -> (i32, i32) {
    %c0_i32 = arith.constant 0 : i32
    %c0_i32_0 = arith.constant 0 : i32
    return %arg0, %c0_i32 : i32, i32
  }
  func.func @transform_2(%arg0: i32) -> (i32, i32) {
    %c0_i32 = arith.constant 0 : i32
    %c0_i32_0 = arith.constant 0 : i32
    %c0_i32_1 = arith.constant 0 : i32
    return %c0_i32, %c0_i32_0 : i32, i32
  }
  func.func @transform_3(%arg0: i32) -> (i32, i32) {
    %c0_i32 = arith.constant 0 : i32
    %c0_i32_0 = arith.constant 0 : i32
    %c0_i32_1 = arith.constant 0 : i32
    return %c0_i32, %c0_i32_0 : i32, i32
  }
  func.func @transform_4(%arg0: i32) -> (i32, i32) {
    %c0_i32 = arith.constant 0 : i32
    %c0_i32_0 = arith.constant 0 : i32
    %c0_i32_1 = arith.constant 0 : i32
    return %c0_i32, %c0_i32_0 : i32, i32
  }
  func.func @transform_5(%arg0: i32) -> (i32, i32) {
    %c0_i32 = arith.constant 0 : i32
    %c0_i32_0 = arith.constant 0 : i32
    %c0_i32_1 = arith.constant 0 : i32
    return %c0_i32, %c0_i32_0 : i32, i32
  }
  func.func @transform_6(%arg0: i32) -> (i32, i32) {
    %c0_i32 = arith.constant 0 : i32
    %c0_i32_0 = arith.constant 0 : i32
    %c0_i32_1 = arith.constant 0 : i32
    return %c0_i32, %c0_i32_0 : i32, i32
  }
  func.func @transform_7(%arg0: i32) -> (i32, i32) {
    %c0_i32 = arith.constant 0 : i32
    %c0_i32_0 = arith.constant 0 : i32
    return %arg0, %c0_i32 : i32, i32
  }
}

</mosaic_0001>

<llo_original>
// kernel: tpu_custom_call.1
$region0: #{tpu_custom_call.1}
  #allocation0 [shape = 'u32[]', space=smem, size = 0x4, offset = 0x4, fixed_abs, tag = 'smem constant byte address 0x4 - core index']
  #allocation1 [shape = 'u32[72,128]{1,0:T(1,128)}', space=vmem, size = 0x9000, scoped, tag = 'internal scratch']
  #allocation2 [shape = 'f32[1,1]{1,0:T(1,128)S(6)}', space=smem, size = 0x200, scoped, tag = 'scoped memory for tpu_custom_call.1']
  %s0 = inlined_call_operand.hbm [shape: f32[4,32], index: 0, kind: input, shape index: {}]
  %s1 = inlined_call_operand.hbm [shape: f32[32,32], index: 1, kind: input, shape index: {}]
  %s2 = inlined_call_operand.hbm [shape: f32[32,64], index: 2, kind: input, shape index: {}]
  %s3 = inlined_call_operand.hbm [shape: f32[32,64], index: 3, kind: input, shape index: {}]
  %s4 = inlined_call_operand.vmem [shape: f32[1,64], index: 4, kind: input, shape index: {}]
  %s5 = inlined_call_operand.vmem [shape: f32[1,64], index: 5, kind: input, shape index: {}]
  %s6 = inlined_call_operand.<no memory space> [shape: f32[1,1], index: 6, kind: input, shape index: {}]
  %s7 = inlined_call_operand.hbm [shape: f32[4,8], index: 7, kind: output, shape index: {}]
  %s8 = sld [smem:[#allocation0]]
  $region54: #{tpu_custom_call.1} parent=0
    _
  %s10 = ssub.s32 1, %s8
  %s11 = scalar_select 0, %s10, %s8
  %12 = sst [smem:[#allocation2]] %s6
  $region1: #{tpu_custom_call.1} parent=0
    #allocation3 [shape = 'u8[2048]{0}', space=vmem, size = 0x800, scoped, tag = 'input window, operand 0, single buffered']
    #allocation4 [shape = 's32[1]{0}', space=sflag, size = 0x4, scoped, tag = 'scoped memory for tpu_custom_call.1']
    #allocation5 [shape = 's32[1]{0}', space=sflag, size = 0x4, scoped, tag = 'scoped memory for tpu_custom_call.1']
    #allocation6 [shape = 'u8[16384]{0}', space=vmem, size = 0x4000, scoped, tag = 'input window, operand 1, single buffered']
    #allocation7 [shape = 's32[1]{0}', space=sflag, size = 0x4, scoped, tag = 'scoped memory for tpu_custom_call.1']
    #allocation8 [shape = 'u8[16384]{0}', space=vmem, size = 0x4000, scoped, tag = 'input window, operand 2, single buffered']
    #allocation9 [shape = 'u8[16384]{0}', space=vmem, size = 0x4000, scoped, tag = 'input window, operand 3, single buffered']
    #allocation10 [shape = 's32[1]{0}', space=sflag, size = 0x4, scoped, tag = 'scoped memory for tpu_custom_call.1']
    #allocation11 [shape = 'u8[2048]{0}', space=vmem, size = 0x800, scoped, tag = 'output window, operand 0, single buffered']
    %13 = vsyncpa [#allocation4], 0
    %14 = vsyncpa [#allocation7], 0
    %15 = vsyncpa [#allocation10], 0
    %16 = vsyncpa [#allocation5], 0
    // Predicated region
    $region2: #{tpu_custom_call.1} parent=1 // pred_check
      _
    $region3: #{tpu_custom_call.1} parent=1 // pred_check_branch
      %18 = sbr.rel (0) target = $region5
    $region4: #{tpu_custom_call.1} parent=1 // pred_region
      %20 = vsyncadd [#allocation4], 0
      %s22 = sshll.u32 %s0, 4
      %s23 = int_to_ptr.hbm [resolvable:$true] %s22
      %s24 = sshll.u32 [#allocation3], 4
      %s25 = int_to_ptr.vmem [resolvable:$true] %s24
      %27 = dma.hbm_to_vmem [thread:$0]  %s23, 64, %s25, [#allocation4]
    $region5: #{tpu_custom_call.1} parent=1 // pred_fallthru
      _
    // Predicated region
    $region6: #{tpu_custom_call.1} parent=1 // pred_check
      _
    $region7: #{tpu_custom_call.1} parent=1 // pred_check_branch
      %29 = sbr.rel (0) target = $region9
    $region8: #{tpu_custom_call.1} parent=1 // pred_region
      %31 = vsyncadd [#allocation7], 0
      %s32 = sshll.u32 %s1, 4
      %s33 = int_to_ptr.hbm [resolvable:$true] %s32
      %s34 = sshll.u32 [#allocation6], 4
      %s35 = int_to_ptr.vmem [resolvable:$true] %s34
      %40 = dma.hbm_to_vmem [thread:$0]  %s33, 512, %s35, [#allocation7], 128, 128, 8
    $region9: #{tpu_custom_call.1} parent=1 // pred_fallthru
      _
    // Predicated region
    $region10: #{tpu_custom_call.1} parent=1 // pred_check
      _
    $region11: #{tpu_custom_call.1} parent=1 // pred_check_branch
      %42 = sbr.rel (0) target = $region13
    $region12: #{tpu_custom_call.1} parent=1 // pred_region
      %44 = vsyncadd [#allocation7], 0
      %s45 = sshll.u32 %s2, 4
      %s46 = int_to_ptr.hbm [resolvable:$true] %s45
      %s47 = sshll.u32 [#allocation8], 4
      %s48 = int_to_ptr.vmem [resolvable:$true] %s47
      %53 = dma.hbm_to_vmem [thread:$0]  %s46, 512, %s48, [#allocation7], 128, 128, 8
    $region13: #{tpu_custom_call.1} parent=1 // pred_fallthru
      _
    // Predicated region
    $region14: #{tpu_custom_call.1} parent=1 // pred_check
      _
    $region15: #{tpu_custom_call.1} parent=1 // pred_check_branch
      %55 = sbr.rel (0) target = $region17
    $region16: #{tpu_custom_call.1} parent=1 // pred_region
      %57 = vsyncadd [#allocation10], 0
      %s58 = sshll.u32 %s3, 4
      %s59 = int_to_ptr.hbm [resolvable:$true] %s58
      %s60 = sshll.u32 [#allocation9], 4
      %s61 = int_to_ptr.vmem [resolvable:$true] %s60
      %66 = dma.hbm_to_vmem [thread:$0]  %s59, 512, %s61, [#allocation10], 128, 128, 8
    $region17: #{tpu_custom_call.1} parent=1 // pred_fallthru
      _
    // Predicated region
    $region18: #{tpu_custom_call.1} parent=1 // pred_check
      _
    $region19: #{tpu_custom_call.1} parent=1 // pred_check_branch
      %68 = sbr.rel (0) target = $region21
    $region20: #{tpu_custom_call.1} parent=1 // pred_region
      _
    $region21: #{tpu_custom_call.1} parent=1 // pred_fallthru
      _
    // Predicated region
    $region22: #{tpu_custom_call.1} parent=1 // pred_check
      _
    $region23: #{tpu_custom_call.1} parent=1 // pred_check_branch
      %70 = sbr.rel (0) target = $region25
    $region24: #{tpu_custom_call.1} parent=1 // pred_region
      _
    $region25: #{tpu_custom_call.1} parent=1 // pred_fallthru
      _
    // Predicated region
    $region26: #{tpu_custom_call.1} parent=1 // pred_check
      _
    $region27: #{tpu_custom_call.1} parent=1 // pred_check_branch
      %72 = sbr.rel (0) target = $region29
    $region28: #{tpu_custom_call.1} parent=1 // pred_region
      _
    $region29: #{tpu_custom_call.1} parent=1 // pred_fallthru
      _
    // Predicated region
    $region30: #{tpu_custom_call.1} parent=1 // pred_check
      _
    $region31: #{tpu_custom_call.1} parent=1 // pred_check_branch
      %74 = sbr.rel (0) target = $region33
    $region32: #{tpu_custom_call.1} parent=1 // pred_region
      %76 = dma.done [#allocation4], 64
    $region33: #{tpu_custom_call.1} parent=1 // pred_fallthru
      _
    // Predicated region
    $region34: #{tpu_custom_call.1} parent=1 // pred_check
      _
    $region35: #{tpu_custom_call.1} parent=1 // pred_check_branch
      %78 = sbr.rel (0) target = $region37
    $region36: #{tpu_custom_call.1} parent=1 // pred_region
      %80 = dma.done [#allocation7], 512
    $region37: #{tpu_custom_call.1} parent=1 // pred_fallthru
      _
    // Predicated region
    $region38: #{tpu_custom_call.1} parent=1 // pred_check
      _
    $region39: #{tpu_custom_call.1} parent=1 // pred_check_branch
      %82 = sbr.rel (0) target = $region41
    $region40: #{tpu_custom_call.1} parent=1 // pred_region
      %84 = dma.done [#allocation7], 512
    $region41: #{tpu_custom_call.1} parent=1 // pred_fallthru
      _
    // Predicated region
    $region42: #{tpu_custom_call.1} parent=1 // pred_check
      _
    $region43: #{tpu_custom_call.1} parent=1 // pred_check_branch
      %86 = sbr.rel (0) target = $region45
    $region44: #{tpu_custom_call.1} parent=1 // pred_region
      %88 = dma.done [#allocation10], 512
    $region45: #{tpu_custom_call.1} parent=1 // pred_fallthru
      _
    %v89 = vld [vmem:[#allocation3] sm:$0xf]
    %v90 = vld [vmem:[#allocation8] sm:$0xff]
    %v91 = vld [vmem:[#allocation8 + $0x8] sm:$0xff]
    %v92 = vld [vmem:[#allocation8 + $0x10] sm:$0xff]
    %v93 = vld [vmem:[#allocation8 + $0x18] sm:$0xff]
    %v94 = vld [vmem:[%s4] sm:$0x1]
    %v96 = vperm.slane %v94, 0
    %vm98 = vcmask 261120
    %v100 = vsel %vm98, %v89, 0
    %102 = vmatpush.msra.mxu0 0.0
    %103 = vmatpush.msra.mxu0 0.0
    %104 = vmatpush.msra.mxu0 0.0
    %105 = vmatpush.msra.mxu0 0.0
    %106 = vmatpush.msra.mxu0 0.0
    %107 = vmatpush.msra.mxu0 0.0
    %108 = vmatpush.msra.mxu0 0.0
    %109 = vmatpush.msra.mxu0 0.0
    %110 = vmatpush.msra.mxu0 0.0
    %111 = vmatpush.msra.mxu0 0.0
    %112 = vmatpush.msra.mxu0 0.0
    %113 = vmatpush.msra.mxu0 0.0
    %114 = vmatpush.msra.mxu0 %v93
    %115 = vmatpush.msra.mxu0 %v92
    %116 = vmatpush.msra.mxu0 %v91
    %117 = vmatpush.msra.mxu0 %v90
    %118 = vmatmul.f32.gmra.mxu0 %v100
    %v119 = vpop.f32.mrf.mxu0
    %v120 = vadd.f32 %v96, %v119
    %121 = vdwg.mxu0
    %v122 = vld [vmem:[#allocation6] sm:$0xff]
    %v123 = vld [vmem:[#allocation6 + $0x8] sm:$0xff]
    %v124 = vld [vmem:[#allocation6 + $0x10] sm:$0xff]
    %v125 = vld [vmem:[#allocation6 + $0x18] sm:$0xff]
    %v126 = vld [vmem:[#allocation9] sm:$0xff]
    %v127 = vld [vmem:[#allocation9 + $0x8] sm:$0xff]
    %v128 = vld [vmem:[#allocation9 + $0x10] sm:$0xff]
    %v129 = vld [vmem:[#allocation9 + $0x18] sm:$0xff]
    %v131 = vrot.slane %v120, 1
    %v132 = vrot.slane %v120, 2
    %v133 = vrot.slane %v120, 3
    %v134 = vperm.slane %v120, 0
    %v135 = vperm.slane %v131, 0
    %v136 = vperm.slane %v132, 0
    %v137 = vperm.slane %v133, 0
    %v143 = vsel %vm98, %v122, 0
    %v146 = vsel %vm98, %v123, 0
    %v149 = vsel %vm98, %v124, 0
    %v152 = vsel %vm98, %v125, 0
    %154 = vmatpush.msra.mxu0 0.0
    %155 = vmatpush.msra.mxu0 0.0
    %156 = vmatpush.msra.mxu0 0.0
    %157 = vmatpush.msra.mxu0 0.0
    %158 = vmatpush.msra.mxu0 0.0
    %159 = vmatpush.msra.mxu0 0.0
    %160 = vmatpush.msra.mxu0 0.0
    %161 = vmatpush.msra.mxu0 0.0
    %162 = vmatpush.msra.mxu0 0.0
    %163 = vmatpush.msra.mxu0 0.0
    %164 = vmatpush.msra.mxu0 0.0
    %165 = vmatpush.msra.mxu0 0.0
    %166 = vmatpush.msra.mxu0 %v129
    %167 = vmatpush.msra.mxu0 %v128
    %168 = vmatpush.msra.mxu0 %v127
    %169 = vmatpush.msra.mxu0 %v126
    %170 = vmatmul.f32.gmra.mxu0 %v143
    %v171 = vpop.f32.mrf.mxu0
    %v172 = vadd.f32 %v134, %v171
    %173 = vmatmul.f32.gmra.mxu0 %v146
    %v174 = vpop.f32.mrf.mxu0
    %v175 = vadd.f32 %v135, %v174
    %176 = vmatmul.f32.gmra.mxu0 %v149
    %v177 = vpop.f32.mrf.mxu0
    %v178 = vadd.f32 %v136, %v177
    %179 = vmatmul.f32.gmra.mxu0 %v152
    %v180 = vpop.f32.mrf.mxu0
    %v181 = vadd.f32 %v137, %v180
    %182 = vdwg.mxu0
    %v183 = vmul.f32 %v172, 1.442695
    %v184 = vpow.pop %v183
    %v185 = vmul.f32 %v175, 1.442695
    %v186 = vpow.pop %v185
    %v187 = vmul.f32 %v178, 1.442695
    %v188 = vpow.pop %v187
    %v189 = vmul.f32 %v181, 1.442695
    %v190 = vpow.pop %v189
    %v191 = vsub.f32 %v184, 1.0
    %v192 = vsub.f32 %v186, 1.0
    %v193 = vsub.f32 %v188, 1.0
    %v194 = vsub.f32 %v190, 1.0
    %v195 = vmul.f32 %v191, 1.442695
    %v196 = vpow.pop %v195
    %v197 = vmul.f32 %v192, 1.442695
    %v198 = vpow.pop %v197
    %v199 = vmul.f32 %v193, 1.442695
    %v200 = vpow.pop %v199
    %v201 = vmul.f32 %v194, 1.442695
    %v202 = vpow.pop %v201
    %v203 = vsub.f32 %v196, 1.0
    %v204 = vsub.f32 %v198, 1.0
    %v205 = vsub.f32 %v200, 1.0
    %v206 = vsub.f32 %v202, 1.0
    %vm207 = vcmp.gt.f32.partialorder %v172, 0.0
    %vm208 = vcmp.gt.f32.partialorder %v175, 0.0
    %vm209 = vcmp.gt.f32.partialorder %v178, 0.0
    %vm210 = vcmp.gt.f32.partialorder %v181, 0.0
    %v211 = vsel %vm207, %v172, %v203
    %v212 = vsel %vm208, %v175, %v204
    %v213 = vsel %vm209, %v178, %v205
    %v214 = vsel %vm210, %v181, %v206
    %v215 = vld [vmem:[%s5] sm:$0x1]
    %v217 = vperm.slane %v215, 0
    %v219 = vmul.f32 %v211, %v217
    %v220 = vmul.f32 %v212, %v217
    %v221 = vmul.f32 %v213, %v217
    %v222 = vmul.f32 %v214, %v217
    %vm223 = vcmask 523264
    %v224 = vsel %vm223, %v219, 0.0
    %225 = vadd.xlane.f32.xlu0 %v224
    %v226 = vpop.xlane.xlu0 %225
    %v227 = vsel %vm223, %v220, 0.0
    %228 = vadd.xlane.f32.xlu0 %v227
    %v229 = vpop.xlane.xlu0 %228
    %v230 = vsel %vm223, %v221, 0.0
    %231 = vadd.xlane.f32.xlu0 %v230
    %v232 = vpop.xlane.xlu0 %231
    %v233 = vsel %vm223, %v222, 0.0
    %234 = vadd.xlane.f32.xlu0 %v233
    %v235 = vpop.xlane.xlu0 %234
    %s236 = sld [smem:[#allocation2]]
    %v237 = vstv %s236
    %v238 = vadd.f32 %v226, %v237
    %v239 = vadd.f32 %v229, %v237
    %v240 = vadd.f32 %v232, %v237
    %v241 = vadd.f32 %v235, %v237
    %v242 = vtanh.pop %v238
    %v243 = vtanh.pop %v239
    %v244 = vtanh.pop %v240
    %v245 = vtanh.pop %v241
    %v250 = vlaneseq
    %v251 = vand.u32 %v250, 127
    %v252 = vperm.slane %v242, %v251
    %v253 = vperm.slane %v243, %v251
    %v254 = vperm.slane %v244, %v251
    %v255 = vperm.slane %v245, %v251
    %vm256 = vcmask 1041409
    %v257 = vsel %vm256, %v253, %v252
    %vm258 = vcmask 1042434
    %v259 = vsel %vm258, %v254, %v257
    %vm260 = vcmask 1043459
    %v261 = vsel %vm260, %v255, %v259
    %vm263 = vcmask 60416
    %v264 = vsel %vm263, %v261, -inf
    %265 = vmax.xlane.f32.xlu0 %v264
    %v266 = vpop.xlane.xlu0 %265
    %v268 = vperm.slane %v266, 0
    %v269 = vperm.slane %v266, 1
    %v270 = vperm.slane %v266, 2
    %v271 = vperm.slane %v266, 3
    %v276 = vsub.f32 %v242, %v268
    %v277 = vsub.f32 %v243, %v269
    %v278 = vsub.f32 %v244, %v270
    %v279 = vsub.f32 %v245, %v271
    %v280 = vmul.f32 %v276, 1.442695
    %v281 = vpow.pop %v280
    %v282 = vmul.f32 %v277, 1.442695
    %v283 = vpow.pop %v282
    %v284 = vmul.f32 %v278, 1.442695
    %v285 = vpow.pop %v284
    %v286 = vmul.f32 %v279, 1.442695
    %v287 = vpow.pop %v286
    %292 = vset.pattern.permute.xlu0 0
    %293 = vperm.xlu0 %292, %v281
    %v294 = vpop.permute.xlu0 %293
    %295 = vset.pattern.permute.xlu0 0
    %296 = vperm.xlu0 %295, %v283
    %v297 = vpop.permute.xlu0 %296
    %298 = vset.pattern.permute.xlu0 0
    %299 = vperm.xlu0 %298, %v285
    %v300 = vpop.permute.xlu0 %299
    %301 = vset.pattern.permute.xlu0 0
    %302 = vperm.xlu0 %301, %v287
    %v303 = vpop.permute.xlu0 %302
    %v304 = vperm.slane %v294, %v251
    %v305 = vperm.slane %v297, %v251
    %v306 = vperm.slane %v300, %v251
    %v307 = vperm.slane %v303, %v251
    %v308 = vsel %vm256, %v305, %v304
    %v309 = vsel %vm258, %v306, %v308
    %v310 = vsel %vm260, %v307, %v309
    %v312 = vsel %vm263, %v310, 0.0
    %313 = vadd.xlane.f32.xlu0 %v312
    %v314 = vpop.xlane.xlu0 %313
    %v315 = vrcp.pop %v314
    %v316 = vmul.f32 %v314, %v315
    %v317 = vsub.f32 1.0, %v316
    %v318 = vmul.f32 %v315, %v317
    %v319 = vadd.f32 %v315, %v318
    %vm320 = vweird.f32 %v314
    %vm321 = vweird.f32 %v315
    %vm322 = vmor %vm320, %vm321
    %v323 = vsel %vm322, %v315, %v319
    %v324 = vand.u32 2147483647, %v314
    %vm325 = vcmp.eq.f32.partialorder %v324, 8.507059e+37
    %v326 = vand.u32 %v314, 2147483648
    %v327 = vor.u32 1.1754944e-38, %v326
    %v328 = vsel %vm325, %v327, %v323
    %v330 = vperm.slane %v328, 0
    %v331 = vperm.slane %v328, 1
    %v332 = vperm.slane %v328, 2
    %v333 = vperm.slane %v328, 3
    %v338 = vmul.f32 %v281, %v330
    %v339 = vmul.f32 %v283, %v331
    %v340 = vmul.f32 %v285, %v332
    %v341 = vmul.f32 %v287, %v333
    %346 = vset.pattern.permute.xlu0 0
    %347 = vperm.xlu0 %346, %v338
    %v348 = vpop.permute.xlu0 %347
    %349 = vset.pattern.permute.xlu0 0
    %350 = vperm.xlu0 %349, %v339
    %v351 = vpop.permute.xlu0 %350
    %352 = vset.pattern.permute.xlu0 0
    %353 = vperm.xlu0 %352, %v340
    %v354 = vpop.permute.xlu0 %353
    %355 = vset.pattern.permute.xlu0 0
    %356 = vperm.xlu0 %355, %v341
    %v357 = vpop.permute.xlu0 %356
    %v358 = vperm.slane %v348, %v251
    %v359 = vperm.slane %v351, %v251
    %v360 = vperm.slane %v354, %v251
    %v361 = vperm.slane %v357, %v251
    %v362 = vsel %vm256, %v359, %v358
    %v363 = vsel %vm258, %v360, %v362
    %v364 = vsel %vm260, %v361, %v363
    %366 = vst.msk [vmem:[#allocation11] sm:$0xf] %vm263, %v364
    // Predicated region
    $region46: #{tpu_custom_call.1} parent=1 // pred_check
      _
    $region47: #{tpu_custom_call.1} parent=1 // pred_check_branch
      %368 = sbr.rel (0) target = $region49
    $region48: #{tpu_custom_call.1} parent=1 // pred_region
      %370 = vsyncadd [#allocation5], 0
      %s372 = sshll.u32 [#allocation11], 4
      %s373 = int_to_ptr.vmem [resolvable:$true] %s372
      %s374 = sshll.u32 %s7, 4
      %s375 = int_to_ptr.hbm [resolvable:$true] %s374
      %377 = dma.vmem_to_hbm [thread:$0]  %s373, 64, %s375, [#allocation5]
    $region49: #{tpu_custom_call.1} parent=1 // pred_fallthru
      _
    // Predicated region
    $region50: #{tpu_custom_call.1} parent=1 // pred_check
      _
    $region51: #{tpu_custom_call.1} parent=1 // pred_check_branch
      %379 = sbr.rel (0) target = $region53
    $region52: #{tpu_custom_call.1} parent=1 // pred_region
      %381 = dma.done [#allocation5], 64
    $region53: #{tpu_custom_call.1} parent=1 // pred_fallthru
      _
    %382 = vsyncpa [#allocation4], 1
    %383 = vsyncpa [#allocation7], 1
    %384 = vsyncpa [#allocation10], 1
    %385 = vsyncpa [#allocation5], 1

</llo_original>
